<compile_context>
chip_gen: v5e
topology: v5e:2x2
jax: 0.10.0
libtpu: 0.0.40
codegen_flags: <defaults>
</compile_context>

<pallas_src>
import functools

import jax
import jax.numpy as jnp
from jax import lax
from jax.experimental import pallas as pl
from jax.experimental.pallas import tpu as pltpu


def _contrastive_loss_kernel(xp_ref, xq_ref, y_ref, loss_ref, *, margin,
                             normalize):
    # Load native-dtype tiles, upcast once to f32 for all arithmetic.
    xp = xp_ref[...].astype(jnp.float32)          # (TB, D)
    xq = xq_ref[...].astype(jnp.float32)          # (TB, D)
    y = y_ref[...].astype(jnp.float32)            # (TB, 1)

    if normalize:
        # ||p/|p| - q/|q|||^2 = 2 - 2 * <p,q> / (|p| |q|)
        # (matches the PyTorch module, which also has no eps clamp on the norm)
        s_pp = jnp.sum(xp * xp, axis=1, keepdims=True)    # (TB, 1)
        s_qq = jnp.sum(xq * xq, axis=1, keepdims=True)    # (TB, 1)
        s_pq = jnp.sum(xp * xq, axis=1, keepdims=True)    # (TB, 1)
        distance = 2.0 - 2.0 * s_pq * lax.rsqrt(s_pp * s_qq)
    else:
        diff = xp - xq
        distance = jnp.sum(diff * diff, axis=1, keepdims=True)

    # loss = y * d + (1 - y) * relu(margin - d)
    loss_ref[...] = y * distance + (1.0 - y) * jnp.maximum(margin - distance,
                                                           0.0)


def _pick_batch_tile(batch, feat, in_itemsize):
    # 2 inputs x 2 pipeline buffers of a (TB, D) tile; keep under ~24 MiB so
    # the pipeline fits the smallest default scoped VMEM (v6e/v7x: 32 MiB,
    # v5e raised via vmem_limit_bytes) with headroom for y / output / misc.
    budget_bytes = 24 * 1024 * 1024
    per_row_bytes = 2 * 2 * feat * in_itemsize
    tb = max(8, min(1024, budget_bytes // per_row_bytes))
    tb = (tb // 8) * 8                      # sublane-aligned tile
    b_ceil8 = ((batch + 7) // 8) * 8
    return min(tb, b_ceil8)


def _pad_rows(a, rows, value):
    if a.shape[0] == rows:
        return a
    pad = jnp.full((rows - a.shape[0],) + a.shape[1:], value, dtype=a.dtype)
    return jnp.concatenate([a, pad], axis=0)


def contrastive_loss(x_p, x_q, y, *, margin=1.0, normalize=True,
                     reduction="mean"):
    """Pallas TPU implementation of ContrastiveLoss.forward.

    x_p, x_q: (B, D) float arrays (f32 or bf16 — passed through natively).
    y:        (B,) labels in {0, 1} (1 = similar pair).
    Returns a scalar f32 loss for reduction in {"mean", "sum"}, or per-sample
    losses for reduction="none".
    """
    assert x_p.shape == x_q.shape and x_p.ndim == 2
    if reduction not in ("mean", "sum", "none"):
        raise ValueError(f"unsupported reduction: {reduction}")
    B, D = x_p.shape

    y2d = jnp.asarray(y, jnp.float32).reshape(B, 1)

    itemsize = max(jnp.dtype(x_p.dtype).itemsize, jnp.dtype(x_q.dtype).itemsize)
    tb = _pick_batch_tile(B, D, itemsize)
    nb = -(-B // tb)                 # cdiv
    b_pad = nb * tb

    # Pad the batch to a tile multiple. Pad rows use finite values (ones) so
    # no NaNs are produced, and they are sliced off before the reduction.
    xp_pad = _pad_rows(x_p, b_pad, 1)
    xq_pad = _pad_rows(x_q, b_pad, 1)
    y_pad = _pad_rows(y2d, b_pad, 0.0)

    kernel = functools.partial(
        _contrastive_loss_kernel,
        margin=float(margin),
        normalize=normalize,
    )

    per_row = pl.pallas_call(
        kernel,
        out_shape=jax.ShapeDtypeStruct((b_pad, 1), jnp.float32),
        grid=(nb,),
        in_specs=[
            pl.BlockSpec((tb, D), lambda i: (i, 0)),
            pl.BlockSpec((tb, D), lambda i: (i, 0)),
            pl.BlockSpec((tb, 1), lambda i: (i, 0)),
        ],
        out_specs=pl.BlockSpec((tb, 1), lambda i: (i, 0)),
        compiler_params=pltpu.CompilerParams(
            dimension_semantics=("parallel",),      # megacore-shardable on v7x
            vmem_limit_bytes=32 * 1024 * 1024,
        ),
    )(xp_pad, xq_pad, y_pad)

    per_row = per_row[:B, 0]
    if reduction == "mean":
        return jnp.mean(per_row)
    if reduction == "sum":
        return jnp.sum(per_row)
    return per_row


def _reference(x_p, x_q, y, margin=1.0, normalize=True, reduction="mean"):
    x_p = jnp.asarray(x_p, jnp.float32)
    x_q = jnp.asarray(x_q, jnp.float32)
    y = jnp.asarray(y, jnp.float32)
    if normalize:
        x_p = x_p / jnp.sqrt(jnp.sum(x_p ** 2, axis=1, keepdims=True))
        x_q = x_q / jnp.sqrt(jnp.sum(x_q ** 2, axis=1, keepdims=True))
    d = jnp.sum((x_p - x_q) ** 2, axis=1)
    loss = y * d + (1.0 - y) * jnp.maximum(margin - d, 0.0)
    return jnp.mean(loss) if reduction == "mean" else jnp.sum(loss)


if __name__ == "__main__":
    key = jax.random.PRNGKey(0)
    k1, k2, k3 = jax.random.split(key, 3)

    B, D = 8, 32
    x_p = jax.random.normal(k1, (B, D), dtype=jnp.float32)
    x_q = jax.random.normal(k2, (B, D), dtype=jnp.float32)
    y = jax.random.bernoulli(k3, 0.5, (B,)).astype(jnp.float32)

    # Default config: mean reduction, normalize=True.
    loss = jax.block_until_ready(contrastive_loss(x_p, x_q, y))
    ref = _reference(x_p, x_q, y)
    assert jnp.allclose(loss, ref, atol=1e-4, rtol=1e-4), (loss, ref)

    # Sum reduction, no normalization (exercises the other kernel branch).
    loss2 = jax.block_until_ready(
        contrastive_loss(x_p, x_q, y, margin=0.5, normalize=False,
                         reduction="sum"))
    ref2 = _reference(x_p, x_q, y, margin=0.5, normalize=False,
                      reduction="sum")
    assert jnp.allclose(loss2, ref2, atol=1e-4, rtol=1e-4), (loss2, ref2)

    # bf16 inputs ride through the kernel natively (no wrapper upcast).
    loss3 = jax.block_until_ready(
        contrastive_loss(x_p.astype(jnp.bfloat16), x_q.astype(jnp.bfloat16), y))
    ref3 = _reference(x_p.astype(jnp.bfloat16), x_q.astype(jnp.bfloat16), y)
    assert jnp.allclose(loss3, ref3, atol=1e-3, rtol=1e-3), (loss3, ref3)

    print("KERNEL_OK")
</pallas_src>

<mosaic_0001>
module attributes {stable_mosaic.version = 11 : i64} {
  func.func @_contrastive_loss_kernel(%arg0: i32, %arg1: memref<8x32xf32, #tpu.memory_space<vmem>>, %arg2: memref<8x32xf32, #tpu.memory_space<vmem>>, %arg3: memref<8x1xf32, #tpu.memory_space<vmem>>, %arg4: memref<8x1xf32, #tpu.memory_space<vmem>>) attributes {dimension_semantics = [#tpu.dimension_semantics<parallel>], iteration_bounds = array<i64: 1>, scalar_prefetch = 0 : i64, scratch_operands = 0 : i64, tpu.core_type = #tpu.core_type<tc>, window_params = [{transform_indices = @transform_0, window_bounds = array<i64: 8, 32>}, {transform_indices = @transform_1, window_bounds = array<i64: 8, 32>}, {transform_indices = @transform_2, window_bounds = array<i64: 8, 1>}, {transform_indices = @transform_3, window_bounds = array<i64: 8, 1>}]} {
    %c0 = arith.constant 0 : index
    %c0_0 = arith.constant 0 : index
    %0 = vector.load %arg1[%c0, %c0_0] : memref<8x32xf32, #tpu.memory_space<vmem>>, vector<8x32xf32>
    %c0_1 = arith.constant 0 : index
    %c0_2 = arith.constant 0 : index
    %1 = vector.load %arg2[%c0_1, %c0_2] : memref<8x32xf32, #tpu.memory_space<vmem>>, vector<8x32xf32>
    %c0_3 = arith.constant 0 : index
    %c0_4 = arith.constant 0 : index
    %2 = vector.load %arg3[%c0_3, %c0_4] : memref<8x1xf32, #tpu.memory_space<vmem>>, vector<8x1xf32>
    %3 = arith.mulf %0, %0 : vector<8x32xf32>
    %cst = arith.constant dense<0.000000e+00> : vector<8xf32>
    %4 = vector.multi_reduction <add>, %3, %cst [1] : vector<8x32xf32> to vector<8xf32>
    %5 = vector.shape_cast %4 : vector<8xf32> to vector<8x1xf32>
    %6 = arith.mulf %1, %1 : vector<8x32xf32>
    %cst_5 = arith.constant dense<0.000000e+00> : vector<8xf32>
    %7 = vector.multi_reduction <add>, %6, %cst_5 [1] : vector<8x32xf32> to vector<8xf32>
    %8 = vector.shape_cast %7 : vector<8xf32> to vector<8x1xf32>
    %9 = arith.mulf %0, %1 : vector<8x32xf32>
    %cst_6 = arith.constant dense<0.000000e+00> : vector<8xf32>
    %10 = vector.multi_reduction <add>, %9, %cst_6 [1] : vector<8x32xf32> to vector<8xf32>
    %11 = vector.shape_cast %10 : vector<8xf32> to vector<8x1xf32>
    %cst_7 = arith.constant 2.000000e+00 : f32
    %12 = vector.broadcast %cst_7 : f32 to vector<8x1xf32>
    %13 = arith.mulf %12, %11 : vector<8x1xf32>
    %14 = arith.mulf %5, %8 : vector<8x1xf32>
    %15 = math.rsqrt %14 : vector<8x1xf32>
    %16 = arith.mulf %13, %15 : vector<8x1xf32>
    %cst_8 = arith.constant 2.000000e+00 : f32
    %17 = vector.broadcast %cst_8 : f32 to vector<8x1xf32>
    %18 = arith.subf %17, %16 : vector<8x1xf32>
    %19 = arith.mulf %2, %18 : vector<8x1xf32>
    %cst_9 = arith.constant 1.000000e+00 : f32
    %20 = vector.broadcast %cst_9 : f32 to vector<8x1xf32>
    %21 = arith.subf %20, %2 : vector<8x1xf32>
    %cst_10 = arith.constant 1.000000e+00 : f32
    %22 = vector.broadcast %cst_10 : f32 to vector<8x1xf32>
    %23 = arith.subf %22, %18 : vector<8x1xf32>
    %cst_11 = arith.constant 0.000000e+00 : f32
    %24 = vector.broadcast %cst_11 : f32 to vector<8x1xf32>
    %25 = arith.maximumf %23, %24 : vector<8x1xf32>
    %26 = arith.mulf %21, %25 : vector<8x1xf32>
    %27 = arith.addf %19, %26 : vector<8x1xf32>
    %c0_12 = arith.constant 0 : index
    %c0_13 = arith.constant 0 : index
    %28 = vector.load %arg4[%c0_12, %c0_13] : memref<8x1xf32, #tpu.memory_space<vmem>>, vector<8x1xf32>
    tpu.vector_store %arg4[%c0_12, %c0_13], %27 {strides = array<i32>} : memref<8x1xf32, #tpu.memory_space<vmem>>, vector<8x1xf32>,
    return
  }
  func.func @transform_0(%arg0: i32) -> (i32, i32) {
    %c0_i32 = arith.constant 0 : i32
    %c0_i32_0 = arith.constant 0 : i32
    return %arg0, %c0_i32 : i32, i32
  }
  func.func @transform_1(%arg0: i32) -> (i32, i32) {
    %c0_i32 = arith.constant 0 : i32
    %c0_i32_0 = arith.constant 0 : i32
    return %arg0, %c0_i32 : i32, i32
  }
  func.func @transform_2(%arg0: i32) -> (i32, i32) {
    %c0_i32 = arith.constant 0 : i32
    %c0_i32_0 = arith.constant 0 : i32
    return %arg0, %c0_i32 : i32, i32
  }
  func.func @transform_3(%arg0: i32) -> (i32, i32) {
    %c0_i32 = arith.constant 0 : i32
    %c0_i32_0 = arith.constant 0 : i32
    return %arg0, %c0_i32 : i32, i32
  }
}

</mosaic_0001>

<llo_original>
// kernel: tpu_custom_call.1
$region0: #{tpu_custom_call.1}
  #allocation0 [shape = 'u32[]', space=smem, size = 0x4, offset = 0x4, fixed_abs, tag = 'smem constant byte address 0x4 - core index']
  #allocation1 [shape = 'u32[72,128]{1,0:T(1,128)}', space=vmem, size = 0x9000, scoped, tag = 'internal scratch']
  %s0 = inlined_call_operand.vmem [shape: f32[8,32], index: 0, kind: input, shape index: {}]
  %s1 = inlined_call_operand.hbm [shape: f32[8,32], index: 1, kind: input, shape index: {}]
  %s2 = inlined_call_operand.vmem [shape: f32[8,1], index: 2, kind: input, shape index: {}]
  %s3 = inlined_call_operand.vmem [shape: f32[8,1], index: 3, kind: output, shape index: {}]
  %s4 = sld [smem:[#allocation0]]
  $region26: #{tpu_custom_call.1} parent=0
    _
  %s6 = ssub.s32 1, %s4
  %s7 = scalar_select 0, %s6, %s4
  $region1: #{tpu_custom_call.1} parent=0
    #allocation2 [shape = 'u8[4096]{0}', space=vmem, size = 0x1000, scoped, tag = 'input window, operand 1, single buffered']
    #allocation3 [shape = 's32[1]{0}', space=sflag, size = 0x4, scoped, tag = 'scoped memory for tpu_custom_call.1']
    %8 = vsyncpa [#allocation3], 0
    // Predicated region
    $region2: #{tpu_custom_call.1} parent=1 // pred_check
      _
    $region3: #{tpu_custom_call.1} parent=1 // pred_check_branch
      %10 = sbr.rel (0) target = $region5
    $region4: #{tpu_custom_call.1} parent=1 // pred_region
      _
    $region5: #{tpu_custom_call.1} parent=1 // pred_fallthru
      _
    // Predicated region
    $region6: #{tpu_custom_call.1} parent=1 // pred_check
      _
    $region7: #{tpu_custom_call.1} parent=1 // pred_check_branch
      %12 = sbr.rel (0) target = $region9
    $region8: #{tpu_custom_call.1} parent=1 // pred_region
      %14 = vsyncadd [#allocation3], 0
      %s16 = sshll.u32 %s1, 4
      %s17 = int_to_ptr.hbm [resolvable:$true] %s16
      %s18 = sshll.u32 [#allocation2], 4
      %s19 = int_to_ptr.vmem [resolvable:$true] %s18
      %21 = dma.hbm_to_vmem [thread:$0]  %s17, 128, %s19, [#allocation3]
    $region9: #{tpu_custom_call.1} parent=1 // pred_fallthru
      _
    // Predicated region
    $region10: #{tpu_custom_call.1} parent=1 // pred_check
      _
    $region11: #{tpu_custom_call.1} parent=1 // pred_check_branch
      %23 = sbr.rel (0) target = $region13
    $region12: #{tpu_custom_call.1} parent=1 // pred_region
      _
    $region13: #{tpu_custom_call.1} parent=1 // pred_fallthru
      _
    // Predicated region
    $region14: #{tpu_custom_call.1} parent=1 // pred_check
      _
    $region15: #{tpu_custom_call.1} parent=1 // pred_check_branch
      %25 = sbr.rel (0) target = $region17
    $region16: #{tpu_custom_call.1} parent=1 // pred_region
      %27 = dma.done [#allocation3], 128
    $region17: #{tpu_custom_call.1} parent=1 // pred_fallthru
      _
    %v28 = vld [vmem:[%s0] sm:$0xff]
    %v29 = vld [vmem:[#allocation2] sm:$0xff]
    %v30 = vld [vmem:[%s2] sm:$0xff]
    %v31 = vmul.f32 %v28, %v28
    %vm32 = vcmask 261120
    %v33 = vsel %vm32, %v31, 0.0
    %34 = vadd.xlane.f32.xlu0 %v33
    %v35 = vpop.xlane.xlu0 %34
    %v36 = vmul.f32 %v29, %v29
    %v37 = vsel %vm32, %v36, 0.0
    %38 = vadd.xlane.f32.xlu0 %v37
    %v39 = vpop.xlane.xlu0 %38
    %v40 = vmul.f32 %v28, %v29
    %v41 = vsel %vm32, %v40, 0.0
    %42 = vadd.xlane.f32.xlu0 %v41
    %v43 = vpop.xlane.xlu0 %42
    %v44 = vmul.f32 %v43, 2.0
    %v45 = vmul.f32 %v35, %v39
    %v46 = vrsqrt.pop %v45
    %v47 = vmul.f32 %v46, %v45
    %v48 = vmul.f32 %v47, %v46
    %v49 = vmul.f32 0.5, %v48
    %v50 = vsub.f32 1.5, %v49
    %v51 = vmul.f32 %v46, %v50
    %vm52 = vweird.f32 %v45
    %vm53 = vweird.f32 %v46
    %vm54 = vmor %vm52, %vm53
    %v55 = vsel %vm54, %v46, %v51
    %v56 = vmul.f32 %v44, %v55
    %v57 = vsub.f32 2.0, %v56
    %v58 = vmul.f32 %v30, %v57
    %v59 = vsub.f32 1.0, %v30
    %v60 = vsub.f32 1.0, %v57
    %v61 = vmax.f32 %v60, 0.0
    %v62 = vmul.f32 %v59, %v61
    %v63 = vadd.f32 %v58, %v62
    %vm64 = vcmask 7168
    %65 = vst.msk [vmem:[%s3] sm:$0xff] %vm64, %v63
    // Predicated region
    $region18: #{tpu_custom_call.1} parent=1 // pred_check
      _
    $region19: #{tpu_custom_call.1} parent=1 // pred_check_branch
      %67 = sbr.rel (0) target = $region21
    $region20: #{tpu_custom_call.1} parent=1 // pred_region
      _
    $region21: #{tpu_custom_call.1} parent=1 // pred_fallthru
      _
    // Predicated region
    $region22: #{tpu_custom_call.1} parent=1 // pred_check
      _
    $region23: #{tpu_custom_call.1} parent=1 // pred_check_branch
      %69 = sbr.rel (0) target = $region25
    $region24: #{tpu_custom_call.1} parent=1 // pred_region
      _
    $region25: #{tpu_custom_call.1} parent=1 // pred_fallthru
      _
    %70 = vsyncpa [#allocation3], 1

</llo_original>
